<compile_context>
chip_gen: v7x
topology: tpu7x:2x2x1
jax: 0.10.0
libtpu: 0.0.40
codegen_flags: <defaults>
</compile_context>

<pallas_src>
import jax
import jax.numpy as jnp
from jax.experimental import pallas as pl
from jax.experimental.pallas import tpu as pltpu

NUM_LAYERS = 4


def _lstm_stack_kernel(x_ref, h_ref, c_ref, w_ref, b_ref,
                       h_out_ref, c_out_ref, y_ref):
    """4 chained LSTM cells, one time step, fully resident in VMEM.

    x_ref:   (B, H)         input (module requires input_size == hidden_size)
    h_ref:   (B, L*H)       lane-dense hidden state, layer l in cols [l*H, (l+1)*H)
    c_ref:   (B, L*H)       lane-dense cell state
    w_ref:   (L, 2H, 4H)    fused [W_ih ; W_hh], gate order [i|f|g|o] (f32 or bf16)
    b_ref:   (L, 1, 4H)     combined bias_ih + bias_hh (f32)
    h_out/c_out: (B, L*H)   aliased onto h_ref / c_ref
    y_ref:   (B, H)         last layer's new hidden state (the module's `output`)
    """
    H = x_ref.shape[-1]
    mm_dtype = w_ref.dtype

    inp = x_ref[...]                                     # (B, H)
    h_all = h_ref[...]                                   # (B, L*H) one full-width load
    c_all = c_ref[...]                                   # (B, L*H)

    h_parts, c_parts = [], []
    for layer in range(NUM_LAYERS):                      # static unroll (4 layers)
        h = h_all[:, layer * H:(layer + 1) * H]          # (B, H)
        c = c_all[:, layer * H:(layer + 1) * H]          # (B, H)

        # Single fused matmul per layer: [x | h] @ [W_ih ; W_hh]  (K = 2H)
        xin = jnp.concatenate([inp, h], axis=-1).astype(mm_dtype)   # (B, 2H)
        gates = jnp.dot(xin, w_ref[layer],
                        preferred_element_type=jnp.float32) + b_ref[layer]  # (B, 4H) f32

        # Full-width transcendentals on the 128-lane gate vreg; slice results after.
        sig = jax.nn.sigmoid(gates)                      # (B, 4H)
        th = jnp.tanh(gates)                             # (B, 4H)
        i_g = sig[:, 0 * H:1 * H]
        f_g = sig[:, 1 * H:2 * H]
        g_g = th[:, 2 * H:3 * H]
        o_g = sig[:, 3 * H:4 * H]

        c_new = f_g * c + i_g * g_g                      # f32 elementwise (v5e-safe)
        h_new = o_g * jnp.tanh(c_new)
        h_parts.append(h_new)
        c_parts.append(c_new)
        inp = h_new                                      # next layer's input

    # Single lane-dense (B, L*H) store per state -> unmasked full-width vst.
    h_out_ref[...] = jnp.concatenate(h_parts, axis=-1)
    c_out_ref[...] = jnp.concatenate(c_parts, axis=-1)
    y_ref[...] = h_parts[-1]                             # module `output` (last layer h)


def prepare_params(w_ih_pt, w_hh_pt, b_ih, b_hh, matmul_dtype=jnp.float32):
    """PyTorch LSTMCell params -> kernel layout. Host-side layout plumbing, done once.

    w_ih_pt: (L, 4H, D), w_hh_pt: (L, 4H, H), b_ih/b_hh: (L, 4H).
    Returns w_cat: (L, 2H, 4H) in `matmul_dtype`, b: (L, 1, 4H) f32.
    """
    w_cat = jnp.concatenate([jnp.transpose(w_ih_pt, (0, 2, 1)),
                             jnp.transpose(w_hh_pt, (0, 2, 1))], axis=1)
    w_cat = w_cat.astype(matmul_dtype)
    b = (b_ih + b_hh)[:, None, :].astype(jnp.float32)
    return w_cat, b


def custom_lstm_forward(x, hx, cx, w_cat, b):
    """Single-step dense path of CustomLSTM.forward.

    x: (B, 1, D), hx/cx: (L, B, H). Returns (output (B,1,H), (hx_new, cx_new)),
    matching the PyTorch module.
    """
    B, _, D = x.shape
    L, _, H = hx.shape
    assert L == NUM_LAYERS and D == H

    x2 = x[:, 0, :].astype(jnp.float32)                  # squeeze(1) -> (B, D)
    # Lane-dense state layout: (L, B, H) -> (B, L*H) so state loads/stores are 128-lane.
    h_in = jnp.transpose(hx, (1, 0, 2)).reshape(B, L * H).astype(jnp.float32)
    c_in = jnp.transpose(cx, (1, 0, 2)).reshape(B, L * H).astype(jnp.float32)

    vmem = pl.BlockSpec(memory_space=pltpu.MemorySpace.VMEM)
    h_out, c_out, y = pl.pallas_call(
        _lstm_stack_kernel,
        out_shape=(jax.ShapeDtypeStruct((B, L * H), jnp.float32),
                   jax.ShapeDtypeStruct((B, L * H), jnp.float32),
                   jax.ShapeDtypeStruct((B, H), jnp.float32)),
        in_specs=[vmem] * 5,
        out_specs=(vmem, vmem, vmem),
        input_output_aliases={1: 0, 2: 1},               # hx -> h_out, cx -> c_out
    )(x2, h_in, c_in, w_cat, b)

    hx_new = jnp.transpose(h_out.reshape(B, L, H), (1, 0, 2))
    cx_new = jnp.transpose(c_out.reshape(B, L, H), (1, 0, 2))
    output = y[:, None, :]                               # (B, 1, H)
    return output, (hx_new, cx_new)


def _reference_forward(x, hx, cx, w_ih_pt, w_hh_pt, b_ih, b_hh):
    """Pure-JAX reference of the PyTorch math (PyTorch weight layout)."""
    H = hx.shape[-1]
    inp = x[:, 0, :]
    h_out, c_out = [], []
    for l in range(NUM_LAYERS):
        gates = inp @ w_ih_pt[l].T + hx[l] @ w_hh_pt[l].T + b_ih[l] + b_hh[l]
        i_g = jax.nn.sigmoid(gates[:, 0 * H:1 * H])
        f_g = jax.nn.sigmoid(gates[:, 1 * H:2 * H])
        g_g = jnp.tanh(gates[:, 2 * H:3 * H])
        o_g = jax.nn.sigmoid(gates[:, 3 * H:4 * H])
        c_n = f_g * cx[l] + i_g * g_g
        h_n = o_g * jnp.tanh(c_n)
        h_out.append(h_n)
        c_out.append(c_n)
        inp = h_n
    h_out = jnp.stack(h_out)
    c_out = jnp.stack(c_out)
    return h_out[-1][:, None, :], (h_out, c_out)


if __name__ == "__main__":
    B = 8            # batch
    H = 32           # hidden_size == input_size (required by the module's forward)
    D = H

    key = jax.random.PRNGKey(0)
    keys = jax.random.split(key, 8)

    # nn.LSTMCell-style init: uniform(-1/sqrt(H), 1/sqrt(H)), PyTorch layouts.
    k = 1.0 / (H ** 0.5)
    w_ih_pt = jax.random.uniform(keys[0], (NUM_LAYERS, 4 * H, D), jnp.float32, -k, k)
    w_hh_pt = jax.random.uniform(keys[1], (NUM_LAYERS, 4 * H, H), jnp.float32, -k, k)
    b_ih = jax.random.uniform(keys[2], (NUM_LAYERS, 4 * H), jnp.float32, -k, k)
    b_hh = jax.random.uniform(keys[3], (NUM_LAYERS, 4 * H), jnp.float32, -k, k)

    # Inputs / initial state.
    x = jax.random.normal(keys[4], (B, 1, D), jnp.float32)
    hx = jax.random.normal(keys[5], (NUM_LAYERS, B, H), jnp.float32)
    cx = jax.random.normal(keys[6], (NUM_LAYERS, B, H), jnp.float32)

    ref_out, (ref_h, ref_c) = _reference_forward(x, hx, cx, w_ih_pt, w_hh_pt, b_ih, b_hh)

    fwd = jax.jit(custom_lstm_forward)

    # f32 matmul weights (default; safe on all generations incl. v5e).
    w_f32, b_f32 = prepare_params(w_ih_pt, w_hh_pt, b_ih, b_hh, jnp.float32)
    out, (h_new, c_new) = fwd(x, hx, cx, w_f32, b_f32)
    jax.block_until_ready((out, h_new, c_new))
    assert out.shape == (B, 1, H)
    assert h_new.shape == (NUM_LAYERS, B, H) and c_new.shape == (NUM_LAYERS, B, H)
    assert jnp.max(jnp.abs(out - ref_out)) < 1e-4
    assert jnp.max(jnp.abs(h_new - ref_h)) < 1e-4
    assert jnp.max(jnp.abs(c_new - ref_c)) < 1e-4

    # bf16 matmul weights/activations (MXU-native on v6e/v7x); elementwise stays f32.
    w_bf16, b_bf = prepare_params(w_ih_pt, w_hh_pt, b_ih, b_hh, jnp.bfloat16)
    out_b, (h_b, c_b) = fwd(x, hx, cx, w_bf16, b_bf)
    jax.block_until_ready((out_b, h_b, c_b))
    assert jnp.max(jnp.abs(out_b - ref_out)) < 5e-2
    assert jnp.max(jnp.abs(h_b - ref_h)) < 5e-2
    assert jnp.max(jnp.abs(c_b - ref_c)) < 5e-2

    print("KERNEL_OK")
</pallas_src>

<mosaic_0001>
module attributes {stable_mosaic.version = 11 : i64} {
  func.func @_lstm_stack_kernel(%arg0: memref<8x32xf32, #tpu.memory_space<vmem>>, %arg1: memref<8x128xf32, #tpu.memory_space<vmem>>, %arg2: memref<8x128xf32, #tpu.memory_space<vmem>>, %arg3: memref<4x64x128xf32, #tpu.memory_space<vmem>>, %arg4: memref<4x1x128xf32, #tpu.memory_space<vmem>>, %arg5: memref<8x128xf32, #tpu.memory_space<vmem>>, %arg6: memref<8x128xf32, #tpu.memory_space<vmem>>, %arg7: memref<8x32xf32, #tpu.memory_space<vmem>>) attributes {dimension_semantics = [], scalar_prefetch = 0 : i64, scratch_operands = 0 : i64, tpu.core_type = #tpu.core_type<tc>} {
    %c0 = arith.constant 0 : index
    %c0_0 = arith.constant 0 : index
    %0 = vector.load %arg0[%c0, %c0_0] : memref<8x32xf32, #tpu.memory_space<vmem>>, vector<8x32xf32>
    %c0_1 = arith.constant 0 : index
    %c0_2 = arith.constant 0 : index
    %1 = vector.load %arg1[%c0_1, %c0_2] : memref<8x128xf32, #tpu.memory_space<vmem>>, vector<8x128xf32>
    %c0_3 = arith.constant 0 : index
    %c0_4 = arith.constant 0 : index
    %2 = vector.load %arg2[%c0_3, %c0_4] : memref<8x128xf32, #tpu.memory_space<vmem>>, vector<8x128xf32>
    %3 = vector.extract_strided_slice %1 {offsets = [0, 0], sizes = [8, 32], strides = [1, 1]} : vector<8x128xf32> to vector<8x32xf32>
    %4 = vector.extract_strided_slice %2 {offsets = [0, 0], sizes = [8, 32], strides = [1, 1]} : vector<8x128xf32> to vector<8x32xf32>
    %5 = tpu.concatenate %0, %3 in 1 : vector<8x32xf32>, vector<8x32xf32> -> vector<8x64xf32>
    %c0_5 = arith.constant 0 : index
    %c0_6 = arith.constant 0 : index
    %c0_7 = arith.constant 0 : index
    %6 = vector.load %arg3[%c0_5, %c0_6, %c0_7] : memref<4x64x128xf32, #tpu.memory_space<vmem>>, vector<1x64x128xf32>
    %7 = vector.shape_cast %6 : vector<1x64x128xf32> to vector<64x128xf32>
    %cst = arith.constant dense<0.000000e+00> : vector<8x128xf32>
    %8 = tpu.matmul %5, %7, %cst {dimension_numbers = #tpu.dot_dimension_numbers<[1], [0], [0], [1], [0, 0, 1, 1], [], []>} : vector<8x64xf32>, vector<64x128xf32>, vector<8x128xf32> -> vector<8x128xf32>
    %c0_8 = arith.constant 0 : index
    %c0_9 = arith.constant 0 : index
    %c0_10 = arith.constant 0 : index
    %9 = vector.load %arg4[%c0_8, %c0_9, %c0_10] : memref<4x1x128xf32, #tpu.memory_space<vmem>>, vector<1x1x128xf32>
    %10 = vector.shape_cast %9 : vector<1x1x128xf32> to vector<1x128xf32>
    %11 = vector.broadcast %10 : vector<1x128xf32> to vector<8x128xf32>
    %12 = arith.addf %8, %11 : vector<8x128xf32>
    %13 = arith.negf %12 : vector<8x128xf32>
    %14 = math.exp %13 : vector<8x128xf32>
    %cst_11 = arith.constant 1.000000e+00 : f32
    %15 = vector.broadcast %cst_11 : f32 to vector<8x128xf32>
    %16 = arith.addf %15, %14 : vector<8x128xf32>
    %17 = arith.divf %15, %16 : vector<8x128xf32>
    %18 = math.tanh %12 : vector<8x128xf32>
    %19 = vector.extract_strided_slice %17 {offsets = [0, 0], sizes = [8, 32], strides = [1, 1]} : vector<8x128xf32> to vector<8x32xf32>
    %20 = vector.extract_strided_slice %17 {offsets = [0, 32], sizes = [8, 32], strides = [1, 1]} : vector<8x128xf32> to vector<8x32xf32>
    %21 = vector.extract_strided_slice %18 {offsets = [0, 64], sizes = [8, 32], strides = [1, 1]} : vector<8x128xf32> to vector<8x32xf32>
    %22 = vector.extract_strided_slice %17 {offsets = [0, 96], sizes = [8, 32], strides = [1, 1]} : vector<8x128xf32> to vector<8x32xf32>
    %23 = arith.mulf %20, %4 : vector<8x32xf32>
    %24 = arith.mulf %19, %21 : vector<8x32xf32>
    %25 = arith.addf %23, %24 : vector<8x32xf32>
    %26 = math.tanh %25 : vector<8x32xf32>
    %27 = arith.mulf %22, %26 : vector<8x32xf32>
    %28 = vector.extract_strided_slice %1 {offsets = [0, 32], sizes = [8, 32], strides = [1, 1]} : vector<8x128xf32> to vector<8x32xf32>
    %29 = vector.extract_strided_slice %2 {offsets = [0, 32], sizes = [8, 32], strides = [1, 1]} : vector<8x128xf32> to vector<8x32xf32>
    %30 = tpu.concatenate %27, %28 in 1 : vector<8x32xf32>, vector<8x32xf32> -> vector<8x64xf32>
    %c1 = arith.constant 1 : index
    %c0_12 = arith.constant 0 : index
    %c0_13 = arith.constant 0 : index
    %31 = vector.load %arg3[%c1, %c0_12, %c0_13] : memref<4x64x128xf32, #tpu.memory_space<vmem>>, vector<1x64x128xf32>
    %32 = vector.shape_cast %31 : vector<1x64x128xf32> to vector<64x128xf32>
    %cst_14 = arith.constant dense<0.000000e+00> : vector<8x128xf32>
    %33 = tpu.matmul %30, %32, %cst_14 {dimension_numbers = #tpu.dot_dimension_numbers<[1], [0], [0], [1], [0, 0, 1, 1], [], []>} : vector<8x64xf32>, vector<64x128xf32>, vector<8x128xf32> -> vector<8x128xf32>
    %c1_15 = arith.constant 1 : index
    %c0_16 = arith.constant 0 : index
    %c0_17 = arith.constant 0 : index
    %34 = vector.load %arg4[%c1_15, %c0_16, %c0_17] : memref<4x1x128xf32, #tpu.memory_space<vmem>>, vector<1x1x128xf32>
    %35 = vector.shape_cast %34 : vector<1x1x128xf32> to vector<1x128xf32>
    %36 = vector.broadcast %35 : vector<1x128xf32> to vector<8x128xf32>
    %37 = arith.addf %33, %36 : vector<8x128xf32>
    %38 = arith.negf %37 : vector<8x128xf32>
    %39 = math.exp %38 : vector<8x128xf32>
    %cst_18 = arith.constant 1.000000e+00 : f32
    %40 = vector.broadcast %cst_18 : f32 to vector<8x128xf32>
    %41 = arith.addf %40, %39 : vector<8x128xf32>
    %42 = arith.divf %40, %41 : vector<8x128xf32>
    %43 = math.tanh %37 : vector<8x128xf32>
    %44 = vector.extract_strided_slice %42 {offsets = [0, 0], sizes = [8, 32], strides = [1, 1]} : vector<8x128xf32> to vector<8x32xf32>
    %45 = vector.extract_strided_slice %42 {offsets = [0, 32], sizes = [8, 32], strides = [1, 1]} : vector<8x128xf32> to vector<8x32xf32>
    %46 = vector.extract_strided_slice %43 {offsets = [0, 64], sizes = [8, 32], strides = [1, 1]} : vector<8x128xf32> to vector<8x32xf32>
    %47 = vector.extract_strided_slice %42 {offsets = [0, 96], sizes = [8, 32], strides = [1, 1]} : vector<8x128xf32> to vector<8x32xf32>
    %48 = arith.mulf %45, %29 : vector<8x32xf32>
    %49 = arith.mulf %44, %46 : vector<8x32xf32>
    %50 = arith.addf %48, %49 : vector<8x32xf32>
    %51 = math.tanh %50 : vector<8x32xf32>
    %52 = arith.mulf %47, %51 : vector<8x32xf32>
    %53 = vector.extract_strided_slice %1 {offsets = [0, 64], sizes = [8, 32], strides = [1, 1]} : vector<8x128xf32> to vector<8x32xf32>
    %54 = vector.extract_strided_slice %2 {offsets = [0, 64], sizes = [8, 32], strides = [1, 1]} : vector<8x128xf32> to vector<8x32xf32>
    %55 = tpu.concatenate %52, %53 in 1 : vector<8x32xf32>, vector<8x32xf32> -> vector<8x64xf32>
    %c2 = arith.constant 2 : index
    %c0_19 = arith.constant 0 : index
    %c0_20 = arith.constant 0 : index
    %56 = vector.load %arg3[%c2, %c0_19, %c0_20] : memref<4x64x128xf32, #tpu.memory_space<vmem>>, vector<1x64x128xf32>
    %57 = vector.shape_cast %56 : vector<1x64x128xf32> to vector<64x128xf32>
    %cst_21 = arith.constant dense<0.000000e+00> : vector<8x128xf32>
    %58 = tpu.matmul %55, %57, %cst_21 {dimension_numbers = #tpu.dot_dimension_numbers<[1], [0], [0], [1], [0, 0, 1, 1], [], []>} : vector<8x64xf32>, vector<64x128xf32>, vector<8x128xf32> -> vector<8x128xf32>
    %c2_22 = arith.constant 2 : index
    %c0_23 = arith.constant 0 : index
    %c0_24 = arith.constant 0 : index
    %59 = vector.load %arg4[%c2_22, %c0_23, %c0_24] : memref<4x1x128xf32, #tpu.memory_space<vmem>>, vector<1x1x128xf32>
    %60 = vector.shape_cast %59 : vector<1x1x128xf32> to vector<1x128xf32>
    %61 = vector.broadcast %60 : vector<1x128xf32> to vector<8x128xf32>
    %62 = arith.addf %58, %61 : vector<8x128xf32>
    %63 = arith.negf %62 : vector<8x128xf32>
    %64 = math.exp %63 : vector<8x128xf32>
    %cst_25 = arith.constant 1.000000e+00 : f32
    %65 = vector.broadcast %cst_25 : f32 to vector<8x128xf32>
    %66 = arith.addf %65, %64 : vector<8x128xf32>
    %67 = arith.divf %65, %66 : vector<8x128xf32>
    %68 = math.tanh %62 : vector<8x128xf32>
    %69 = vector.extract_strided_slice %67 {offsets = [0, 0], sizes = [8, 32], strides = [1, 1]} : vector<8x128xf32> to vector<8x32xf32>
    %70 = vector.extract_strided_slice %67 {offsets = [0, 32], sizes = [8, 32], strides = [1, 1]} : vector<8x128xf32> to vector<8x32xf32>
    %71 = vector.extract_strided_slice %68 {offsets = [0, 64], sizes = [8, 32], strides = [1, 1]} : vector<8x128xf32> to vector<8x32xf32>
    %72 = vector.extract_strided_slice %67 {offsets = [0, 96], sizes = [8, 32], strides = [1, 1]} : vector<8x128xf32> to vector<8x32xf32>
    %73 = arith.mulf %70, %54 : vector<8x32xf32>
    %74 = arith.mulf %69, %71 : vector<8x32xf32>
    %75 = arith.addf %73, %74 : vector<8x32xf32>
    %76 = math.tanh %75 : vector<8x32xf32>
    %77 = arith.mulf %72, %76 : vector<8x32xf32>
    %78 = vector.extract_strided_slice %1 {offsets = [0, 96], sizes = [8, 32], strides = [1, 1]} : vector<8x128xf32> to vector<8x32xf32>
    %79 = vector.extract_strided_slice %2 {offsets = [0, 96], sizes = [8, 32], strides = [1, 1]} : vector<8x128xf32> to vector<8x32xf32>
    %80 = tpu.concatenate %77, %78 in 1 : vector<8x32xf32>, vector<8x32xf32> -> vector<8x64xf32>
    %c3 = arith.constant 3 : index
    %c0_26 = arith.constant 0 : index
    %c0_27 = arith.constant 0 : index
    %81 = vector.load %arg3[%c3, %c0_26, %c0_27] : memref<4x64x128xf32, #tpu.memory_space<vmem>>, vector<1x64x128xf32>
    %82 = vector.shape_cast %81 : vector<1x64x128xf32> to vector<64x128xf32>
    %cst_28 = arith.constant dense<0.000000e+00> : vector<8x128xf32>
    %83 = tpu.matmul %80, %82, %cst_28 {dimension_numbers = #tpu.dot_dimension_numbers<[1], [0], [0], [1], [0, 0, 1, 1], [], []>} : vector<8x64xf32>, vector<64x128xf32>, vector<8x128xf32> -> vector<8x128xf32>
    %c3_29 = arith.constant 3 : index
    %c0_30 = arith.constant 0 : index
    %c0_31 = arith.constant 0 : index
    %84 = vector.load %arg4[%c3_29, %c0_30, %c0_31] : memref<4x1x128xf32, #tpu.memory_space<vmem>>, vector<1x1x128xf32>
    %85 = vector.shape_cast %84 : vector<1x1x128xf32> to vector<1x128xf32>
    %86 = vector.broadcast %85 : vector<1x128xf32> to vector<8x128xf32>
    %87 = arith.addf %83, %86 : vector<8x128xf32>
    %88 = arith.negf %87 : vector<8x128xf32>
    %89 = math.exp %88 : vector<8x128xf32>
    %cst_32 = arith.constant 1.000000e+00 : f32
    %90 = vector.broadcast %cst_32 : f32 to vector<8x128xf32>
    %91 = arith.addf %90, %89 : vector<8x128xf32>
    %92 = arith.divf %90, %91 : vector<8x128xf32>
    %93 = math.tanh %87 : vector<8x128xf32>
    %94 = vector.extract_strided_slice %92 {offsets = [0, 0], sizes = [8, 32], strides = [1, 1]} : vector<8x128xf32> to vector<8x32xf32>
    %95 = vector.extract_strided_slice %92 {offsets = [0, 32], sizes = [8, 32], strides = [1, 1]} : vector<8x128xf32> to vector<8x32xf32>
    %96 = vector.extract_strided_slice %93 {offsets = [0, 64], sizes = [8, 32], strides = [1, 1]} : vector<8x128xf32> to vector<8x32xf32>
    %97 = vector.extract_strided_slice %92 {offsets = [0, 96], sizes = [8, 32], strides = [1, 1]} : vector<8x128xf32> to vector<8x32xf32>
    %98 = arith.mulf %95, %79 : vector<8x32xf32>
    %99 = arith.mulf %94, %96 : vector<8x32xf32>
    %100 = arith.addf %98, %99 : vector<8x32xf32>
    %101 = math.tanh %100 : vector<8x32xf32>
    %102 = arith.mulf %97, %101 : vector<8x32xf32>
    %103 = tpu.concatenate %27, %52, %77, %102 in 1 : vector<8x32xf32>, vector<8x32xf32>, vector<8x32xf32>, vector<8x32xf32> -> vector<8x128xf32>
    %c0_33 = arith.constant 0 : index
    %c0_34 = arith.constant 0 : index
    %104 = vector.load %arg5[%c0_33, %c0_34] : memref<8x128xf32, #tpu.memory_space<vmem>>, vector<8x128xf32>
    tpu.vector_store %arg5[%c0_33, %c0_34], %103 {strides = array<i32>} : memref<8x128xf32, #tpu.memory_space<vmem>>, vector<8x128xf32>,
    %105 = tpu.concatenate %25, %50, %75, %100 in 1 : vector<8x32xf32>, vector<8x32xf32>, vector<8x32xf32>, vector<8x32xf32> -> vector<8x128xf32>
    %c0_35 = arith.constant 0 : index
    %c0_36 = arith.constant 0 : index
    %106 = vector.load %arg6[%c0_35, %c0_36] : memref<8x128xf32, #tpu.memory_space<vmem>>, vector<8x128xf32>
    tpu.vector_store %arg6[%c0_35, %c0_36], %105 {strides = array<i32>} : memref<8x128xf32, #tpu.memory_space<vmem>>, vector<8x128xf32>,
    %c0_37 = arith.constant 0 : index
    %c0_38 = arith.constant 0 : index
    %107 = vector.load %arg7[%c0_37, %c0_38] : memref<8x32xf32, #tpu.memory_space<vmem>>, vector<8x32xf32>
    tpu.vector_store %arg7[%c0_37, %c0_38], %102 {strides = array<i32>} : memref<8x32xf32, #tpu.memory_space<vmem>>, vector<8x32xf32>,
    return
  }
}

</mosaic_0001>

<llo_original>
// kernel: custom_lstm_forward.1
$region0: #{custom_lstm_forward.1}
  #allocation0 [shape = 'u32[]', space=smem, size = 0x4, offset = 0x4, fixed_abs, tag = 'smem constant byte address 0x4 - core index']
  #allocation1 [shape = 'u32[144,128]{1,0:T(1,128)}', space=vmem, size = 0x12000, scoped, tag = 'internal scratch']
  %s0 = inlined_call_operand.vmem [shape: f32[8,32], index: 0, kind: input, shape index: {}]
  %s1 = inlined_call_operand.vmem [shape: f32[8,128], index: 1, kind: input, shape index: {}, may-alias: {1,5}]
  %s2 = inlined_call_operand.vmem [shape: f32[8,128], index: 2, kind: input, shape index: {}, may-alias: {2,6}]
  %s3 = inlined_call_operand.hbm [shape: f32[4,64,128], index: 3, kind: input, shape index: {}]
  %s4 = inlined_call_operand.vmem [shape: f32[4,1,128], index: 4, kind: input, shape index: {}]
  %s5 = inlined_call_operand.vmem [shape: f32[8,128], index: 5, kind: output, shape index: {0}, may-alias: {1,5}]
  %s6 = inlined_call_operand.vmem [shape: f32[8,128], index: 6, kind: output, shape index: {1}, may-alias: {2,6}]
  %s7 = inlined_call_operand.hbm [shape: f32[8,32], index: 7, kind: output, shape index: {2}]
  %8 = xla_tuple %s5, %s6, %s7
  %s9 = sld [smem:[#allocation0]]
  $region50: #{custom_lstm_forward.1} parent=0
    _
  %s11 = ssub.s32 1, %s9
  %s12 = scalar_select 0, %s11, %s9
  $region1: #{custom_lstm_forward.1} parent=0
    #allocation2 [shape = 'u8[131072]{0}', space=vmem, size = 0x20000, scoped, tag = 'input window, operand 3, single buffered']
    #allocation3 [shape = 's32[1]{0}', space=sflag, size = 0x4, scoped, tag = 'scoped memory for custom_lstm_forward.1']
    #allocation4 [shape = 's32[1]{0}', space=sflag, size = 0x4, scoped, tag = 'scoped memory for custom_lstm_forward.1']
    #allocation5 [shape = 'u8[4096]{0}', space=vmem, size = 0x1000, scoped, tag = 'output window, operand 2, single buffered']
    %13 = vsyncpa [#allocation3], 0
    %14 = vsyncpa [#allocation4], 0
    // Predicated region
    $region2: #{custom_lstm_forward.1} parent=1 // pred_check
      _
    $region3: #{custom_lstm_forward.1} parent=1 // pred_check_branch
      %16 = sbr.rel (0) target = $region5
    $region4: #{custom_lstm_forward.1} parent=1 // pred_region
      _
    $region5: #{custom_lstm_forward.1} parent=1 // pred_fallthru
      _
    // Predicated region
    $region6: #{custom_lstm_forward.1} parent=1 // pred_check
      _
    $region7: #{custom_lstm_forward.1} parent=1 // pred_check_branch
      %18 = sbr.rel (0) target = $region9
    $region8: #{custom_lstm_forward.1} parent=1 // pred_region
      _
    $region9: #{custom_lstm_forward.1} parent=1 // pred_fallthru
      _
    // Predicated region
    $region10: #{custom_lstm_forward.1} parent=1 // pred_check
      _
    $region11: #{custom_lstm_forward.1} parent=1 // pred_check_branch
      %20 = sbr.rel (0) target = $region13
    $region12: #{custom_lstm_forward.1} parent=1 // pred_region
      _
    $region13: #{custom_lstm_forward.1} parent=1 // pred_fallthru
      _
    // Predicated region
    $region14: #{custom_lstm_forward.1} parent=1 // pred_check
      _
    $region15: #{custom_lstm_forward.1} parent=1 // pred_check_branch
      %22 = sbr.rel (0) target = $region17
    $region16: #{custom_lstm_forward.1} parent=1 // pred_region
      %s24 = ssub.s32 4096, 4096
      %25 = vsyncadd [#allocation3], %s24
      %s26 = sshll.u32 [#allocation2], 4
      %s27 = int_to_ptr.vmem [resolvable:$true] %s26
      %32 = dma.hbm_to_vmem [thread:$0]  %s3, 4096, %s27, [#allocation3], 128, 128, 8
    $region17: #{custom_lstm_forward.1} parent=1 // pred_fallthru
      _
    // Predicated region
    $region18: #{custom_lstm_forward.1} parent=1 // pred_check
      _
    $region19: #{custom_lstm_forward.1} parent=1 // pred_check_branch
      %34 = sbr.rel (0) target = $region21
    $region20: #{custom_lstm_forward.1} parent=1 // pred_region
      _
    $region21: #{custom_lstm_forward.1} parent=1 // pred_fallthru
      _
    // Predicated region
    $region22: #{custom_lstm_forward.1} parent=1 // pred_check
      _
    $region23: #{custom_lstm_forward.1} parent=1 // pred_check_branch
      %36 = sbr.rel (0) target = $region25
    $region24: #{custom_lstm_forward.1} parent=1 // pred_region
      %37 = dma.done [#allocation3], 4096
    $region25: #{custom_lstm_forward.1} parent=1 // pred_fallthru
      _
    %v38 = vld [vmem:[%s0] sm:$0xff]
    %v39 = vld [vmem:[%s1] sm:$0xff]
    %v40 = vld [vmem:[%s2] sm:$0xff]
    %42 = vrot.lane.b32.xlu0 %v39, 32
    %v43 = vpop.permute.xlu0 %42
    %vm45 = vcmask 261120
    %v46 = vsel %vm45, %v38, %v43
    %v47 = vld [vmem:[#allocation2] sm:$0xff]
    %v48 = vld [vmem:[#allocation2 + $0x8] sm:$0xff]
    %v49 = vld [vmem:[#allocation2 + $0x10] sm:$0xff]
    %v50 = vld [vmem:[#allocation2 + $0x18] sm:$0xff]
    %v51 = vld [vmem:[#allocation2 + $0x20] sm:$0xff]
    %v52 = vld [vmem:[#allocation2 + $0x28] sm:$0xff]
    %v53 = vld [vmem:[#allocation2 + $0x30] sm:$0xff]
    %v54 = vld [vmem:[#allocation2 + $0x38] sm:$0xff]
    %v55 = vld [vmem:[%s4] sm:$0x1]
    %v57 = vlaneseq
    %v58 = vshrl.u32 %v57, 7
    %v59 = vsub.s32 0, %v58
    %v60 = vrot.slane %v55, %v59
    %vm62 = vcmask 523264
    %v64 = vsel %vm62, %v46, 0
    %66 = vmatprep.subr.mxu0 0.0
    %67 = vmatpush1.msra.mxu0 %v47
    %68 = vmatprep.subr.mxu0 0.0
    %69 = vmatpush1.msra.mxu0 %v48
    %70 = vmatprep.subr.mxu0 0.0
    %71 = vmatpush1.msra.mxu0 %v49
    %72 = vmatprep.subr.mxu0 0.0
    %73 = vmatpush1.msra.mxu0 %v50
    %74 = vmatprep.subr.mxu0 0.0
    %75 = vmatpush1.msra.mxu0 %v51
    %76 = vmatprep.subr.mxu0 0.0
    %77 = vmatpush1.msra.mxu0 %v52
    %78 = vmatprep.subr.mxu0 0.0
    %79 = vmatpush1.msra.mxu0 %v53
    %80 = vmatprep.subr.mxu0 0.0
    %81 = vmatpush1.msra.mxu0 %v54
    %82 = vmatprep.subr.mxu0 0.0
    %83 = vmatpush1.msra.mxu0 0.0
    %84 = vmatprep.subr.mxu0 0.0
    %85 = vmatpush1.msra.mxu0 0.0
    %86 = vmatprep.subr.mxu0 0.0
    %87 = vmatpush1.msra.mxu0 0.0
    %88 = vmatprep.subr.mxu0 0.0
    %89 = vmatpush1.msra.mxu0 0.0
    %90 = vmatprep.subr.mxu0 0.0
    %91 = vmatpush1.msra.mxu0 0.0
    %92 = vmatprep.subr.mxu0 0.0
    %93 = vmatpush1.msra.mxu0 0.0
    %94 = vmatprep.subr.mxu0 0.0
    %95 = vmatpush1.msra.mxu0 0.0
    %96 = vmatprep.subr.mxu0 0.0
    %97 = vmatpush1.msra.mxu0 0.0
    %98 = vmatprep.subr.mxu0 0.0
    %99 = vmatpush1.msra.mxu0 0.0
    %100 = vmatprep.subr.mxu0 0.0
    %101 = vmatpush1.msra.mxu0 0.0
    %102 = vmatprep.subr.mxu0 0.0
    %103 = vmatpush1.msra.mxu0 0.0
    %104 = vmatprep.subr.mxu0 0.0
    %105 = vmatpush1.msra.mxu0 0.0
    %106 = vmatprep.subr.mxu0 0.0
    %107 = vmatpush1.msra.mxu0 0.0
    %108 = vmatprep.subr.mxu0 0.0
    %109 = vmatpush1.msra.mxu0 0.0
    %110 = vmatprep.subr.mxu0 0.0
    %111 = vmatpush1.msra.mxu0 0.0
    %112 = vmatprep.subr.mxu0 0.0
    %113 = vmatpush1.msra.mxu0 0.0
    %114 = vmatprep.subr.mxu0 0.0
    %115 = vmatpush1.msra.mxu0 0.0
    %116 = vmatprep.subr.mxu0 0.0
    %117 = vmatpush1.msra.mxu0 0.0
    %118 = vmatprep.subr.mxu0 0.0
    %119 = vmatpush1.msra.mxu0 0.0
    %120 = vmatprep.subr.mxu0 0.0
    %121 = vmatpush1.msra.mxu0 0.0
    %122 = vmatprep.subr.mxu0 0.0
    %123 = vmatpush1.msra.mxu0 0.0
    %124 = vmatprep.subr.mxu0 0.0
    %125 = vmatpush1.msra.mxu0 0.0
    %126 = vmatprep.subr.mxu0 0.0
    %127 = vmatpush1.msra.mxu0 0.0
    %128 = vmatprep.subr.mxu0 0.0
    %129 = vmatpush1.msra.mxu0 0.0
    %130 = vmatprep.mubr.f32.mxu0 0.0
    %131 = vmatmul.mubr.f32.gmra.mrb[0].mxu0 %v64
    %v132 = vpop.f32.mrb[0].mxu0
    %v133 = vadd.f32 %v60, %v132
    %v134 = vpop.f32.mrb[0].mxu0
    %135 = vdwg.mxu0
    %v136 = vxor.u32 %v133, 2147483648
    %v137 = vmul.f32 %v136, 1.442695
    %v138 = vpow.pop %v137
    %v139 = vadd.f32 %v138, 1.0
    %v140 = vrcp.pop %v139
    %v141 = vmul.f32 1.0, %v140
    %v142 = vtanh.pop %v133
    %144 = vrot.lane.b32.xlu0 %v40, 32
    %v145 = vpop.permute.xlu0 %144
    %v147 = vmul.f32 %v141, %v145
    %149 = vrot.lane.b32.xlu0 %v142, 64
    %v150 = vpop.permute.xlu0 %149
    %v152 = vmul.f32 %v141, %v150
    %154 = vrot.lane.b32.xlu0 %v152, 32
    %v155 = vpop.permute.xlu0 %154
    %v157 = vadd.f32 %v147, %v155
    %v158 = vtanh.pop %v157
    %160 = vrot.lane.b32.xlu0 %v158, 64
    %v161 = vpop.permute.xlu0 %160
    %v163 = vmul.f32 %v141, %v161
    %165 = vrot.lane.b32.xlu0 %v163, 32
    %v166 = vpop.permute.xlu0 %165
    %v168 = vsel %vm45, %v166, %v39
    %s169 = scalar_lea.vmem [#allocation2], 64
    %v170 = vld [vmem:[%s169] sm:$0xff]
    %v171 = vld [vmem:[%s169 + $0x8] sm:$0xff]
    %v172 = vld [vmem:[%s169 + $0x10] sm:$0xff]
    %v173 = vld [vmem:[%s169 + $0x18] sm:$0xff]
    %v174 = vld [vmem:[%s169 + $0x20] sm:$0xff]
    %v175 = vld [vmem:[%s169 + $0x28] sm:$0xff]
    %v176 = vld [vmem:[%s169 + $0x30] sm:$0xff]
    %v177 = vld [vmem:[%s169 + $0x38] sm:$0xff]
    %s178 = scalar_lea.vmem %s4, 1
    %v179 = vld [vmem:[%s178] sm:$0x1]
    %v181 = vlaneseq
    %v182 = vshrl.u32 %v181, 7
    %v183 = vsub.s32 0, %v182
    %v184 = vrot.slane %v179, %v183
    %v187 = vsel %vm62, %v168, 0
    %189 = vmatprep.subr.mxu0 0.0
    %190 = vmatpush1.msra.mxu0 %v170
    %191 = vmatprep.subr.mxu0 0.0
    %192 = vmatpush1.msra.mxu0 %v171
    %193 = vmatprep.subr.mxu0 0.0
    %194 = vmatpush1.msra.mxu0 %v172
    %195 = vmatprep.subr.mxu0 0.0
    %196 = vmatpush1.msra.mxu0 %v173
    %197 = vmatprep.subr.mxu0 0.0
    %198 = vmatpush1.msra.mxu0 %v174
    %199 = vmatprep.subr.mxu0 0.0
    %200 = vmatpush1.msra.mxu0 %v175
    %201 = vmatprep.subr.mxu0 0.0
    %202 = vmatpush1.msra.mxu0 %v176
    %203 = vmatprep.subr.mxu0 0.0
    %204 = vmatpush1.msra.mxu0 %v177
    %205 = vmatprep.subr.mxu0 0.0
    %206 = vmatpush1.msra.mxu0 0.0
    %207 = vmatprep.subr.mxu0 0.0
    %208 = vmatpush1.msra.mxu0 0.0
    %209 = vmatprep.subr.mxu0 0.0
    %210 = vmatpush1.msra.mxu0 0.0
    %211 = vmatprep.subr.mxu0 0.0
    %212 = vmatpush1.msra.mxu0 0.0
    %213 = vmatprep.subr.mxu0 0.0
    %214 = vmatpush1.msra.mxu0 0.0
    %215 = vmatprep.subr.mxu0 0.0
    %216 = vmatpush1.msra.mxu0 0.0
    %217 = vmatprep.subr.mxu0 0.0
    %218 = vmatpush1.msra.mxu0 0.0
    %219 = vmatprep.subr.mxu0 0.0
    %220 = vmatpush1.msra.mxu0 0.0
    %221 = vmatprep.subr.mxu0 0.0
    %222 = vmatpush1.msra.mxu0 0.0
    %223 = vmatprep.subr.mxu0 0.0
    %224 = vmatpush1.msra.mxu0 0.0
    %225 = vmatprep.subr.mxu0 0.0
    %226 = vmatpush1.msra.mxu0 0.0
    %227 = vmatprep.subr.mxu0 0.0
    %228 = vmatpush1.msra.mxu0 0.0
    %229 = vmatprep.subr.mxu0 0.0
    %230 = vmatpush1.msra.mxu0 0.0
    %231 = vmatprep.subr.mxu0 0.0
    %232 = vmatpush1.msra.mxu0 0.0
    %233 = vmatprep.subr.mxu0 0.0
    %234 = vmatpush1.msra.mxu0 0.0
    %235 = vmatprep.subr.mxu0 0.0
    %236 = vmatpush1.msra.mxu0 0.0
    %237 = vmatprep.subr.mxu0 0.0
    %238 = vmatpush1.msra.mxu0 0.0
    %239 = vmatprep.subr.mxu0 0.0
    %240 = vmatpush1.msra.mxu0 0.0
    %241 = vmatprep.subr.mxu0 0.0
    %242 = vmatpush1.msra.mxu0 0.0
    %243 = vmatprep.subr.mxu0 0.0
    %244 = vmatpush1.msra.mxu0 0.0
    %245 = vmatprep.subr.mxu0 0.0
    %246 = vmatpush1.msra.mxu0 0.0
    %247 = vmatprep.subr.mxu0 0.0
    %248 = vmatpush1.msra.mxu0 0.0
    %249 = vmatprep.subr.mxu0 0.0
    %250 = vmatpush1.msra.mxu0 0.0
    %251 = vmatprep.subr.mxu0 0.0
    %252 = vmatpush1.msra.mxu0 0.0
    %253 = vmatprep.mubr.f32.mxu0 0.0
    %254 = vmatmul.mubr.f32.gmra.mrb[0].mxu0 %v187
    %v255 = vpop.f32.mrb[0].mxu0
    %v256 = vadd.f32 %v184, %v255
    %v257 = vpop.f32.mrb[0].mxu0
    %258 = vdwg.mxu0
    %v259 = vxor.u32 %v256, 2147483648
    %v260 = vmul.f32 %v259, 1.442695
    %v261 = vpow.pop %v260
    %v262 = vadd.f32 %v261, 1.0
    %v263 = vrcp.pop %v262
    %v264 = vmul.f32 1.0, %v263
    %v265 = vtanh.pop %v256
    %v266 = vmul.f32 %v264, %v40
    %268 = vrot.lane.b32.xlu0 %v265, 64
    %v269 = vpop.permute.xlu0 %268
    %v271 = vmul.f32 %v264, %v269
    %273 = vrot.lane.b32.xlu0 %v271, 32
    %v274 = vpop.permute.xlu0 %273
    %v276 = vadd.f32 %v266, %v274
    %v277 = vtanh.pop %v276
    %279 = vrot.lane.b32.xlu0 %v277, 64
    %v280 = vpop.permute.xlu0 %279
    %v282 = vmul.f32 %v264, %v280
    %284 = vrot.lane.b32.xlu0 %v282, 32
    %v285 = vpop.permute.xlu0 %284
    %287 = vrot.lane.b32.xlu0 %v39, 96
    %v288 = vpop.permute.xlu0 %287
    %v290 = vsel %vm45, %v285, %v288
    %s291 = scalar_lea.vmem [#allocation2], 128
    %v292 = vld [vmem:[%s291] sm:$0xff]
    %v293 = vld [vmem:[%s291 + $0x8] sm:$0xff]
    %v294 = vld [vmem:[%s291 + $0x10] sm:$0xff]
    %v295 = vld [vmem:[%s291 + $0x18] sm:$0xff]
    %v296 = vld [vmem:[%s291 + $0x20] sm:$0xff]
    %v297 = vld [vmem:[%s291 + $0x28] sm:$0xff]
    %v298 = vld [vmem:[%s291 + $0x30] sm:$0xff]
    %v299 = vld [vmem:[%s291 + $0x38] sm:$0xff]
    %s300 = scalar_lea.vmem %s4, 2
    %v301 = vld [vmem:[%s300] sm:$0x1]
    %v303 = vlaneseq
    %v304 = vshrl.u32 %v303, 7
    %v305 = vsub.s32 0, %v304
    %v306 = vrot.slane %v301, %v305
    %v309 = vsel %vm62, %v290, 0
    %311 = vmatprep.subr.mxu0 0.0
    %312 = vmatpush1.msra.mxu0 %v292
    %313 = vmatprep.subr.mxu0 0.0
    %314 = vmatpush1.msra.mxu0 %v293
    %315 = vmatprep.subr.mxu0 0.0
    %316 = vmatpush1.msra.mxu0 %v294
    %317 = vmatprep.subr.mxu0 0.0
    %318 = vmatpush1.msra.mxu0 %v295
    %319 = vmatprep.subr.mxu0 0.0
    %320 = vmatpush1.msra.mxu0 %v296
    %321 = vmatprep.subr.mxu0 0.0
    %322 = vmatpush1.msra.mxu0 %v297
    %323 = vmatprep.subr.mxu0 0.0
    %324 = vmatpush1.msra.mxu0 %v298
    %325 = vmatprep.subr.mxu0 0.0
    %326 = vmatpush1.msra.mxu0 %v299
    %327 = vmatprep.subr.mxu0 0.0
    %328 = vmatpush1.msra.mxu0 0.0
    %329 = vmatprep.subr.mxu0 0.0
    %330 = vmatpush1.msra.mxu0 0.0
    %331 = vmatprep.subr.mxu0 0.0
    %332 = vmatpush1.msra.mxu0 0.0
    %333 = vmatprep.subr.mxu0 0.0
    %334 = vmatpush1.msra.mxu0 0.0
    %335 = vmatprep.subr.mxu0 0.0
    %336 = vmatpush1.msra.mxu0 0.0
    %337 = vmatprep.subr.mxu0 0.0
    %338 = vmatpush1.msra.mxu0 0.0
    %339 = vmatprep.subr.mxu0 0.0
    %340 = vmatpush1.msra.mxu0 0.0
    %341 = vmatprep.subr.mxu0 0.0
    %342 = vmatpush1.msra.mxu0 0.0
    %343 = vmatprep.subr.mxu0 0.0
    %344 = vmatpush1.msra.mxu0 0.0
    %345 = vmatprep.subr.mxu0 0.0
    %346 = vmatpush1.msra.mxu0 0.0
    %347 = vmatprep.subr.mxu0 0.0
    %348 = vmatpush1.msra.mxu0 0.0
    %349 = vmatprep.subr.mxu0 0.0
    %350 = vmatpush1.msra.mxu0 0.0
    %351 = vmatprep.subr.mxu0 0.0
    %352 = vmatpush1.msra.mxu0 0.0
    %353 = vmatprep.subr.mxu0 0.0
    %354 = vmatpush1.msra.mxu0 0.0
    %355 = vmatprep.subr.mxu0 0.0
    %356 = vmatpush1.msra.mxu0 0.0
    %357 = vmatprep.subr.mxu0 0.0
    %358 = vmatpush1.msra.mxu0 0.0
    %359 = vmatprep.subr.mxu0 0.0
    %360 = vmatpush1.msra.mxu0 0.0
    %361 = vmatprep.subr.mxu0 0.0
    %362 = vmatpush1.msra.mxu0 0.0
    %363 = vmatprep.subr.mxu0 0.0
    %364 = vmatpush1.msra.mxu0 0.0
    %365 = vmatprep.subr.mxu0 0.0
    %366 = vmatpush1.msra.mxu0 0.0
    %367 = vmatprep.subr.mxu0 0.0
    %368 = vmatpush1.msra.mxu0 0.0
    %369 = vmatprep.subr.mxu0 0.0
    %370 = vmatpush1.msra.mxu0 0.0
    %371 = vmatprep.subr.mxu0 0.0
    %372 = vmatpush1.msra.mxu0 0.0
    %373 = vmatprep.subr.mxu0 0.0
    %374 = vmatpush1.msra.mxu0 0.0
    %375 = vmatprep.mubr.f32.mxu0 0.0
    %376 = vmatmul.mubr.f32.gmra.mrb[0].mxu0 %v309
    %v377 = vpop.f32.mrb[0].mxu0
    %v378 = vadd.f32 %v306, %v377
    %v379 = vpop.f32.mrb[0].mxu0
    %380 = vdwg.mxu0
    %v381 = vxor.u32 %v378, 2147483648
    %v382 = vmul.f32 %v381, 1.442695
    %v383 = vpow.pop %v382
    %v384 = vadd.f32 %v383, 1.0
    %v385 = vrcp.pop %v384
    %v386 = vmul.f32 1.0, %v385
    %v387 = vtanh.pop %v378
    %388 = vrot.lane.b32.xlu0 %v40, 96
    %v389 = vpop.permute.xlu0 %388
    %v391 = vmul.f32 %v386, %v389
    %393 = vrot.lane.b32.xlu0 %v387, 64
    %v394 = vpop.permute.xlu0 %393
    %v396 = vmul.f32 %v386, %v394
    %398 = vrot.lane.b32.xlu0 %v396, 32
    %v399 = vpop.permute.xlu0 %398
    %v401 = vadd.f32 %v391, %v399
    %v402 = vtanh.pop %v401
    %404 = vrot.lane.b32.xlu0 %v402, 64
    %v405 = vpop.permute.xlu0 %404
    %v407 = vmul.f32 %v386, %v405
    %409 = vrot.lane.b32.xlu0 %v407, 32
    %v410 = vpop.permute.xlu0 %409
    %412 = vrot.lane.b32.xlu0 %v39, 64
    %v413 = vpop.permute.xlu0 %412
    %v415 = vsel %vm45, %v410, %v413
    %s416 = scalar_lea.vmem [#allocation2], 192
    %v417 = vld [vmem:[%s416] sm:$0xff]
    %v418 = vld [vmem:[%s416 + $0x8] sm:$0xff]
    %v419 = vld [vmem:[%s416 + $0x10] sm:$0xff]
    %v420 = vld [vmem:[%s416 + $0x18] sm:$0xff]
    %v421 = vld [vmem:[%s416 + $0x20] sm:$0xff]
    %v422 = vld [vmem:[%s416 + $0x28] sm:$0xff]
    %v423 = vld [vmem:[%s416 + $0x30] sm:$0xff]
    %v424 = vld [vmem:[%s416 + $0x38] sm:$0xff]
    %s425 = scalar_lea.vmem %s4, 3
    %v426 = vld [vmem:[%s425] sm:$0x1]
    %v428 = vlaneseq
    %v429 = vshrl.u32 %v428, 7
    %v430 = vsub.s32 0, %v429
    %v431 = vrot.slane %v426, %v430
    %v434 = vsel %vm62, %v415, 0
    %436 = vmatprep.subr.mxu0 0.0
    %437 = vmatpush1.msra.mxu0 %v417
    %438 = vmatprep.subr.mxu0 0.0
    %439 = vmatpush1.msra.mxu0 %v418
    %440 = vmatprep.subr.mxu0 0.0
    %441 = vmatpush1.msra.mxu0 %v419
    %442 = vmatprep.subr.mxu0 0.0
    %443 = vmatpush1.msra.mxu0 %v420
    %444 = vmatprep.subr.mxu0 0.0
    %445 = vmatpush1.msra.mxu0 %v421
    %446 = vmatprep.subr.mxu0 0.0
    %447 = vmatpush1.msra.mxu0 %v422
    %448 = vmatprep.subr.mxu0 0.0
    %449 = vmatpush1.msra.mxu0 %v423
    %450 = vmatprep.subr.mxu0 0.0
    %451 = vmatpush1.msra.mxu0 %v424
    %452 = vmatprep.subr.mxu0 0.0
    %453 = vmatpush1.msra.mxu0 0.0
    %454 = vmatprep.subr.mxu0 0.0
    %455 = vmatpush1.msra.mxu0 0.0
    %456 = vmatprep.subr.mxu0 0.0
    %457 = vmatpush1.msra.mxu0 0.0
    %458 = vmatprep.subr.mxu0 0.0
    %459 = vmatpush1.msra.mxu0 0.0
    %460 = vmatprep.subr.mxu0 0.0
    %461 = vmatpush1.msra.mxu0 0.0
    %462 = vmatprep.subr.mxu0 0.0
    %463 = vmatpush1.msra.mxu0 0.0
    %464 = vmatprep.subr.mxu0 0.0
    %465 = vmatpush1.msra.mxu0 0.0
    %466 = vmatprep.subr.mxu0 0.0
    %467 = vmatpush1.msra.mxu0 0.0
    %468 = vmatprep.subr.mxu0 0.0
    %469 = vmatpush1.msra.mxu0 0.0
    %470 = vmatprep.subr.mxu0 0.0
    %471 = vmatpush1.msra.mxu0 0.0
    %472 = vmatprep.subr.mxu0 0.0
    %473 = vmatpush1.msra.mxu0 0.0
    %474 = vmatprep.subr.mxu0 0.0
    %475 = vmatpush1.msra.mxu0 0.0
    %476 = vmatprep.subr.mxu0 0.0
    %477 = vmatpush1.msra.mxu0 0.0
    %478 = vmatprep.subr.mxu0 0.0
    %479 = vmatpush1.msra.mxu0 0.0
    %480 = vmatprep.subr.mxu0 0.0
    %481 = vmatpush1.msra.mxu0 0.0
    %482 = vmatprep.subr.mxu0 0.0
    %483 = vmatpush1.msra.mxu0 0.0
    %484 = vmatprep.subr.mxu0 0.0
    %485 = vmatpush1.msra.mxu0 0.0
    %486 = vmatprep.subr.mxu0 0.0
    %487 = vmatpush1.msra.mxu0 0.0
    %488 = vmatprep.subr.mxu0 0.0
    %489 = vmatpush1.msra.mxu0 0.0
    %490 = vmatprep.subr.mxu0 0.0
    %491 = vmatpush1.msra.mxu0 0.0
    %492 = vmatprep.subr.mxu0 0.0
    %493 = vmatpush1.msra.mxu0 0.0
    %494 = vmatprep.subr.mxu0 0.0
    %495 = vmatpush1.msra.mxu0 0.0
    %496 = vmatprep.subr.mxu0 0.0
    %497 = vmatpush1.msra.mxu0 0.0
    %498 = vmatprep.subr.mxu0 0.0
    %499 = vmatpush1.msra.mxu0 0.0
    %500 = vmatprep.mubr.f32.mxu0 0.0
    %501 = vmatmul.mubr.f32.gmra.mrb[0].mxu0 %v434
    %v502 = vpop.f32.mrb[0].mxu0
    %v503 = vadd.f32 %v431, %v502
    %v504 = vpop.f32.mrb[0].mxu0
    %505 = vdwg.mxu0
    %v506 = vxor.u32 %v503, 2147483648
    %v507 = vmul.f32 %v506, 1.442695
    %v508 = vpow.pop %v507
    %v509 = vadd.f32 %v508, 1.0
    %v510 = vrcp.pop %v509
    %v511 = vmul.f32 1.0, %v510
    %v512 = vtanh.pop %v503
    %513 = vrot.lane.b32.xlu0 %v40, 64
    %v514 = vpop.permute.xlu0 %513
    %v516 = vmul.f32 %v511, %v514
    %518 = vrot.lane.b32.xlu0 %v512, 64
    %v519 = vpop.permute.xlu0 %518
    %v521 = vmul.f32 %v511, %v519
    %523 = vrot.lane.b32.xlu0 %v521, 32
    %v524 = vpop.permute.xlu0 %523
    %v526 = vadd.f32 %v516, %v524
    %v527 = vtanh.pop %v526
    %529 = vrot.lane.b32.xlu0 %v527, 64
    %v530 = vpop.permute.xlu0 %529
    %v532 = vmul.f32 %v511, %v530
    %533 = vrot.lane.b32.xlu0 %v282, 64
    %v534 = vpop.permute.xlu0 %533
    %536 = vrot.lane.b32.xlu0 %v407, 96
    %v537 = vpop.permute.xlu0 %536
    %v539 = vsel %vm45, %v166, %v534
    %v540 = vsel %vm62, %v539, %v537
    %vm541 = vcmask 785408
    %v542 = vsel %vm541, %v540, %v532
    %543 = vst [vmem:[%s5] sm:$0xff] %v542
    %545 = vrot.lane.b32.xlu0 %v157, 96
    %v546 = vpop.permute.xlu0 %545
    %549 = vrot.lane.b32.xlu0 %v401, 32
    %v550 = vpop.permute.xlu0 %549
    %553 = vrot.lane.b32.xlu0 %v526, 64
    %v554 = vpop.permute.xlu0 %553
    %v556 = vsel %vm45, %v546, %v276
    %v557 = vsel %vm62, %v556, %v550
    %v558 = vsel %vm541, %v557, %v554
    %559 = vst [vmem:[%s6] sm:$0xff] %v558
    %561 = vrot.lane.b32.xlu0 %v532, 32
    %v562 = vpop.permute.xlu0 %561
    %564 = vst.msk [vmem:[#allocation5] sm:$0xff] %vm45, %v562
    // Predicated region
    $region26: #{custom_lstm_forward.1} parent=1 // pred_check
      _
    $region27: #{custom_lstm_forward.1} parent=1 // pred_check_branch
      %566 = sbr.rel (0) target = $region29
    $region28: #{custom_lstm_forward.1} parent=1 // pred_region
      _
    $region29: #{custom_lstm_forward.1} parent=1 // pred_fallthru
      _
    // Predicated region
    $region30: #{custom_lstm_forward.1} parent=1 // pred_check
      _
    $region31: #{custom_lstm_forward.1} parent=1 // pred_check_branch
      %568 = sbr.rel (0) target = $region33
    $region32: #{custom_lstm_forward.1} parent=1 // pred_region
      _
    $region33: #{custom_lstm_forward.1} parent=1 // pred_fallthru
      _
    // Predicated region
    $region34: #{custom_lstm_forward.1} parent=1 // pred_check
      _
    $region35: #{custom_lstm_forward.1} parent=1 // pred_check_branch
      %570 = sbr.rel (0) target = $region37
    $region36: #{custom_lstm_forward.1} parent=1 // pred_region
      %s572 = ssub.s32 128, 128
      %573 = vsyncadd [#allocation4], %s572
      %s575 = sshll.u32 [#allocation5], 4
      %s576 = int_to_ptr.vmem [resolvable:$true] %s575
      %578 = dma.vmem_to_hbm [thread:$0]  %s576, 128, %s7, [#allocation4]
    $region37: #{custom_lstm_forward.1} parent=1 // pred_fallthru
      _
    // Predicated region
    $region38: #{custom_lstm_forward.1} parent=1 // pred_check
      _
    $region39: #{custom_lstm_forward.1} parent=1 // pred_check_branch
      %580 = sbr.rel (0) target = $region41
    $region40: #{custom_lstm_forward.1} parent=1 // pred_region
      _
    $region41: #{custom_lstm_forward.1} parent=1 // pred_fallthru
      _
    // Predicated region
    $region42: #{custom_lstm_forward.1} parent=1 // pred_check
      _
    $region43: #{custom_lstm_forward.1} parent=1 // pred_check_branch
      %582 = sbr.rel (0) target = $region45
    $region44: #{custom_lstm_forward.1} parent=1 // pred_region
      _
    $region45: #{custom_lstm_forward.1} parent=1 // pred_fallthru
      _
    // Predicated region
    $region46: #{custom_lstm_forward.1} parent=1 // pred_check
      _
    $region47: #{custom_lstm_forward.1} parent=1 // pred_check_branch
      %584 = sbr.rel (0) target = $region49
    $region48: #{custom_lstm_forward.1} parent=1 // pred_region
      %585 = dma.done [#allocation4], 128
    $region49: #{custom_lstm_forward.1} parent=1 // pred_fallthru
      _
    %586 = vsyncpa [#allocation3], 1
    %587 = vsyncpa [#allocation4], 1

</llo_original>
